<compile_context>
chip_gen: v7x
topology: tpu7x:2x2x1
jax: 0.10.0
libtpu: 0.0.40
codegen_flags: <defaults>
</compile_context>

<pallas_src>
import jax
import jax.numpy as jnp
from jax.experimental import pallas as pl
from jax.experimental.pallas import tpu as pltpu

MARGIN = 10.0
TM_MAX = 1024                        # row-tile cap (10 MiB gather scratch at D=512 f32)
SCRATCH_BUDGET = 12 * 1024 * 1024    # keeps 5*TM*D*itemsize under v5e's 16 MiB scoped default


# ------------------------------- kernel ---------------------------------------

def _l1_energy(r, hs, ts, hi, ti):
    """Five translational L1 energies accumulated elementwise (VALU has slack);
    a single cross-lane (XLU) reduction at the end.  Returns (tm, 1) f32."""
    a = hs + r                 # hs + r   (CSE'd)
    b = hi + r                 # hi + r
    tsum = ts + ti             # ts + ti
    acc = jnp.abs(a - ts)
    acc = acc + jnp.abs(a - ti)
    acc = acc + jnp.abs(b - ts)
    acc = acc + jnp.abs(b - ti)
    acc = acc + jnp.abs(a + hi - tsum)     # hs + hi + r - (ts + ti)
    return jnp.sum(acc, axis=1, keepdims=True)


def _energy_gather_kernel(head_ref, rel_ref, tail_ref,            # SMEM (npad,) int32
                          ent_hbm, rel_hbm, img_hbm,              # HBM tables (pl.ANY)
                          e_ref,                                   # (tm, 1) f32 out block
                          hs_buf, ts_buf, hi_buf, ti_buf, r_buf,   # VMEM (tm, D) scratch
                          sem):                                    # DMA sems (5,)
    tm = hs_buf.shape[0]
    base = pl.program_id(0) * tm
    streams = ((hs_buf, 0), (ts_buf, 1), (hi_buf, 2), (ti_buf, 3), (r_buf, 4))

    # Gather: one (1, D) row-DMA per stream per row, HBM table -> VMEM scratch.
    @pl.loop(0, tm)
    def _(j):
        row = base + j
        h = head_ref[row]
        rl = rel_ref[row]
        tl = tail_ref[row]
        dst = pl.ds(j, 1)
        pltpu.make_async_copy(ent_hbm.at[pl.ds(h, 1)],  hs_buf.at[dst], sem.at[0]).start()
        pltpu.make_async_copy(ent_hbm.at[pl.ds(tl, 1)], ts_buf.at[dst], sem.at[1]).start()
        pltpu.make_async_copy(img_hbm.at[pl.ds(h, 1)],  hi_buf.at[dst], sem.at[2]).start()
        pltpu.make_async_copy(img_hbm.at[pl.ds(tl, 1)], ti_buf.at[dst], sem.at[3]).start()
        pltpu.make_async_copy(rel_hbm.at[pl.ds(rl, 1)], r_buf.at[dst],  sem.at[4]).start()

    # Wait, mirroring the starts one-for-one ((1, D)-sized descriptors on the
    # same semaphores), so the drain is exact regardless of completion order.
    @pl.loop(0, tm)
    def _(j):
        for buf, k in streams:
            pltpu.make_async_copy(buf.at[pl.ds(0, 1)], buf.at[pl.ds(0, 1)], sem.at[k]).wait()

    # Upcast in-kernel (tables may be stored in bf16; cast is hidden under DMA).
    hs = hs_buf[...].astype(jnp.float32)
    ts = ts_buf[...].astype(jnp.float32)
    hi = hi_buf[...].astype(jnp.float32)
    ti = ti_buf[...].astype(jnp.float32)
    r = r_buf[...].astype(jnp.float32)
    e_ref[...] = _l1_energy(r, hs, ts, hi, ti)


# ------------------------------ wrapper ----------------------------------------

def _round_up(n, m):
    return ((n + m - 1) // m) * m


def _tiling(n, d, itemsize):
    per_row = 5 * d * itemsize
    cap = max(8, min(TM_MAX, (SCRATCH_BUDGET // per_row) // 8 * 8))
    tm = min(cap, _round_up(n, 8))
    # Guarantee >= 2 grid steps when there is enough work so (a) the row tiles
    # can be sharded across v7x's two TensorCores and (b) the writeback of
    # step i overlaps the gather of step i+1.
    if n > 8 and _round_up(n, tm) // tm < 2:
        tm = max(8, _round_up((n + 1) // 2, 8))
    npad = _round_up(n, tm)
    return tm, npad


def triple_energies(head, rel, tail, ent_emb, rel_emb, img_ent_emb):
    """Summed L1 translational energy per (head, rel, tail) triple.  (n,) f32.

    Embedding tables stay in HBM; rows are gathered inside the kernel."""
    n = int(head.shape[0])
    d = int(ent_emb.shape[1])
    tbl_dtype = ent_emb.dtype
    assert rel_emb.shape[1] == d and img_ent_emb.shape[1] == d
    assert rel_emb.dtype == tbl_dtype and img_ent_emb.dtype == tbl_dtype
    assert d % 128 == 0, "embedding dim must be lane-aligned (multiple of 128)"

    tm, npad = _tiling(n, d, jnp.dtype(tbl_dtype).itemsize)
    grid = npad // tm

    def pad_idx(x):
        # Only the tiny int32 index vectors are padded (pad rows gather row 0,
        # a valid row, so no OOB DMA); their energies are sliced off below.
        x = x.astype(jnp.int32)
        return x if npad == n else jnp.pad(x, (0, npad - n))

    out = pl.pallas_call(
        _energy_gather_kernel,
        out_shape=jax.ShapeDtypeStruct((npad, 1), jnp.float32),
        grid_spec=pltpu.PrefetchScalarGridSpec(
            num_scalar_prefetch=3,                       # head / rel / tail indices -> SMEM
            grid=(grid,),
            in_specs=[pl.BlockSpec(memory_space=pl.ANY) for _ in range(3)],
            out_specs=pl.BlockSpec((tm, 1), lambda i, *_: (i, 0)),
            scratch_shapes=[pltpu.VMEM((tm, d), tbl_dtype) for _ in range(5)]
                          + [pltpu.SemaphoreType.DMA((5,))]),
        compiler_params=pltpu.CompilerParams(
            dimension_semantics=("parallel",)),
    )(pad_idx(head), pad_idx(rel), pad_idx(tail), ent_emb, rel_emb, img_ent_emb)

    # Padded rows sliced off BEFORE any hinge / mean, so the 1/N normalization
    # always uses the real row count.
    return out[:n, 0]


# ------------------------------ forward pass ------------------------------------

def model_forward(batch_inputs, ent_emb, rel_emb, img_ent_emb, neg_num):
    """batch_inputs: (B, 3) int32; first B/(neg_num+1) rows are positives."""
    b = batch_inputs.shape[0]
    assert b % (neg_num + 1) == 0, "batch must be (neg_num + 1) * len_pos rows"
    len_pos = b // (neg_num + 1)

    # One fused kernel over ALL B rows: positive energies are computed once on
    # the unique positive triples (not neg_num tiled copies).
    e = triple_energies(batch_inputs[:, 0], batch_inputs[:, 1], batch_inputs[:, 2],
                        rel_emb=rel_emb, ent_emb=ent_emb, img_ent_emb=img_ent_emb)

    # pos_triples.repeat(neg_num, 1) pairing: negative i <-> positive i % len_pos.
    e_pos = jnp.tile(e[:len_pos], neg_num)
    e_neg = e[len_pos:]
    # margin_ranking_loss with y = -1:  mean(max(0, (e_pos - e_neg) + margin))
    return jnp.mean(jnp.maximum(e_pos - e_neg + MARGIN, 0.0))


def model_forward_ref(batch_inputs, ent_emb, rel_emb, img_ent_emb, neg_num):
    """Pure-JAX reference reproducing the original module (tile + 10 L1 sums)."""
    b = batch_inputs.shape[0]
    len_pos = b // (neg_num + 1)
    pos = jnp.tile(batch_inputs[:len_pos], (neg_num, 1))
    neg = batch_inputs[len_pos:]

    def energy(trip):
        hs = ent_emb[trip[:, 0]]
        ts = ent_emb[trip[:, 2]]
        hi = img_ent_emb[trip[:, 0]]
        ti = img_ent_emb[trip[:, 2]]
        r = rel_emb[trip[:, 1]]
        return (jnp.abs(hs + r - ts).sum(1) + jnp.abs(hs + r - ti).sum(1)
                + jnp.abs(hi + r - ts).sum(1) + jnp.abs(hi + r - ti).sum(1)
                + jnp.abs(hs + hi + r - (ts + ti)).sum(1))

    e_pos, e_neg = energy(pos), energy(neg)
    return jnp.mean(jnp.maximum(e_pos - e_neg + MARGIN, 0.0))


# ------------------------------- demo setup -------------------------------------

def xavier_normal(key, shape):
    fan_out, fan_in = shape
    std = (2.0 / (fan_in + fan_out)) ** 0.5
    return std * jax.random.normal(key, shape, dtype=jnp.float32)


if __name__ == "__main__":
    key = jax.random.PRNGKey(0)
    k_ent, k_rel, k_img, k_h, k_r, k_t = jax.random.split(key, 6)

    # Small synthetic config consistent with the module: entity / relation /
    # image embedding dim = 2*dim = 2*r_dim = 512 (lane-aligned).
    num_entities = 10
    num_relations = 5
    dim = 256
    r_dim = 256
    neg_num = 2
    len_pos = 8
    batch = (neg_num + 1) * len_pos      # 24

    ent_emb = xavier_normal(k_ent, (num_entities, 2 * dim))
    rel_emb = xavier_normal(k_rel, (num_relations, 2 * r_dim))
    # Stand-in for the __init__-time multimodal (FFT-filtered) entity table.
    img_ent_emb = 0.1 * jax.random.normal(
        k_img, (num_entities, 2 * dim), dtype=jnp.float32)

    heads = jax.random.randint(k_h, (batch, 1), 0, num_entities, jnp.int32)
    rels = jax.random.randint(k_r, (batch, 1), 0, num_relations, jnp.int32)
    tails = jax.random.randint(k_t, (batch, 1), 0, num_entities, jnp.int32)
    batch_inputs = jnp.concatenate([heads, rels, tails], axis=1)   # (24, 3)

    loss = model_forward(batch_inputs, ent_emb, rel_emb, img_ent_emb, neg_num)
    loss = jax.block_until_ready(loss)

    loss_ref = model_forward_ref(batch_inputs, ent_emb, rel_emb,
                                 img_ent_emb, neg_num)
    assert jnp.allclose(loss, loss_ref, rtol=1e-4, atol=1e-3), (loss, loss_ref)

    print("KERNEL_OK")
</pallas_src>

<mosaic_0001>
module attributes {stable_mosaic.version = 11 : i64} {
  func.func @_energy_gather_kernel(%arg0: i32, %arg1: memref<32xi32, #tpu.memory_space<smem>>, %arg2: memref<32xi32, #tpu.memory_space<smem>>, %arg3: memref<32xi32, #tpu.memory_space<smem>>, %arg4: memref<10x512xf32, #tpu.memory_space<any>>, %arg5: memref<5x512xf32, #tpu.memory_space<any>>, %arg6: memref<10x512xf32, #tpu.memory_space<any>>, %arg7: memref<16x1xf32, #tpu.memory_space<vmem>>, %arg8: memref<16x512xf32, #tpu.memory_space<vmem>>, %arg9: memref<16x512xf32, #tpu.memory_space<vmem>>, %arg10: memref<16x512xf32, #tpu.memory_space<vmem>>, %arg11: memref<16x512xf32, #tpu.memory_space<vmem>>, %arg12: memref<16x512xf32, #tpu.memory_space<vmem>>, %arg13: memref<5x!tpu.dma_semaphore, #tpu.memory_space<semaphore_mem>>) attributes {dimension_semantics = [#tpu.dimension_semantics<parallel>], iteration_bounds = array<i64: 2>, scalar_prefetch = 3 : i64, scratch_operands = 6 : i64, tpu.core_type = #tpu.core_type<tc>, window_params = [{}, {}, {}, {transform_indices = @transform_3, window_bounds = array<i64: 16, 1>}]} {
    %c16_i32 = arith.constant 16 : i32
    %0 = arith.muli %arg0, %c16_i32 : i32
    %c0_i32 = arith.constant 0 : i32
    %c16_i32_0 = arith.constant 16 : i32
    %1 = arith.addi %c0_i32, %c16_i32_0 : i32
    %c1_i32 = arith.constant 1 : i32
    scf.for %arg14 = %c0_i32 to %1 step %c1_i32  : i32 {
      %c1_i32_16 = arith.constant 1 : i32
      %29 = arith.muli %arg14, %c1_i32_16 : i32
      %c0_i32_17 = arith.constant 0 : i32
      %30 = arith.addi %c0_i32_17, %29 : i32
      %31 = arith.addi %0, %30 : i32
      %32 = arith.index_cast %31 : i32 to index
      %33 = memref.load %arg1[%32] : memref<32xi32, #tpu.memory_space<smem>>
      %34 = arith.index_cast %31 : i32 to index
      %35 = memref.load %arg2[%34] : memref<32xi32, #tpu.memory_space<smem>>
      %36 = arith.index_cast %31 : i32 to index
      %37 = memref.load %arg3[%36] : memref<32xi32, #tpu.memory_space<smem>>
      %c0_i32_18 = arith.constant 0 : i32
      %c0_i32_19 = arith.constant 0 : i32
      %38 = tpu.memref_slice %arg4[%33, %c0_i32_19] : memref<10x512xf32, #tpu.memory_space<any>> -> memref<1x512xf32, #tpu.memory_space<any>>
      %c0_i32_20 = arith.constant 0 : i32
      %39 = tpu.memref_slice %arg8[%30, %c0_i32_20] : memref<16x512xf32, #tpu.memory_space<vmem>> -> memref<1x512xf32, #tpu.memory_space<vmem>>
      %40 = tpu.memref_slice %arg13[%c0_i32_18] : memref<5x!tpu.dma_semaphore, #tpu.memory_space<semaphore_mem>> -> memref<1x!tpu.dma_semaphore, #tpu.memory_space<semaphore_mem>>
      %41 = tpu.memref_squeeze %40 : memref<1x!tpu.dma_semaphore, #tpu.memory_space<semaphore_mem>> -> memref<!tpu.dma_semaphore, #tpu.memory_space<semaphore_mem>>
      tpu.enqueue_dma source(%38 : memref<1x512xf32, #tpu.memory_space<any>>) target(%39 : memref<1x512xf32, #tpu.memory_space<vmem>>) target_semaphore(%41 : memref<!tpu.dma_semaphore, #tpu.memory_space<semaphore_mem>>)
      %c1_i32_21 = arith.constant 1 : i32
      %c0_i32_22 = arith.constant 0 : i32
      %42 = tpu.memref_slice %arg4[%37, %c0_i32_22] : memref<10x512xf32, #tpu.memory_space<any>> -> memref<1x512xf32, #tpu.memory_space<any>>
      %c0_i32_23 = arith.constant 0 : i32
      %43 = tpu.memref_slice %arg9[%30, %c0_i32_23] : memref<16x512xf32, #tpu.memory_space<vmem>> -> memref<1x512xf32, #tpu.memory_space<vmem>>
      %44 = tpu.memref_slice %arg13[%c1_i32_21] : memref<5x!tpu.dma_semaphore, #tpu.memory_space<semaphore_mem>> -> memref<1x!tpu.dma_semaphore, #tpu.memory_space<semaphore_mem>>
      %45 = tpu.memref_squeeze %44 : memref<1x!tpu.dma_semaphore, #tpu.memory_space<semaphore_mem>> -> memref<!tpu.dma_semaphore, #tpu.memory_space<semaphore_mem>>
      tpu.enqueue_dma source(%42 : memref<1x512xf32, #tpu.memory_space<any>>) target(%43 : memref<1x512xf32, #tpu.memory_space<vmem>>) target_semaphore(%45 : memref<!tpu.dma_semaphore, #tpu.memory_space<semaphore_mem>>)
      %c2_i32 = arith.constant 2 : i32
      %c0_i32_24 = arith.constant 0 : i32
      %46 = tpu.memref_slice %arg6[%33, %c0_i32_24] : memref<10x512xf32, #tpu.memory_space<any>> -> memref<1x512xf32, #tpu.memory_space<any>>
      %c0_i32_25 = arith.constant 0 : i32
      %47 = tpu.memref_slice %arg10[%30, %c0_i32_25] : memref<16x512xf32, #tpu.memory_space<vmem>> -> memref<1x512xf32, #tpu.memory_space<vmem>>
      %48 = tpu.memref_slice %arg13[%c2_i32] : memref<5x!tpu.dma_semaphore, #tpu.memory_space<semaphore_mem>> -> memref<1x!tpu.dma_semaphore, #tpu.memory_space<semaphore_mem>>
      %49 = tpu.memref_squeeze %48 : memref<1x!tpu.dma_semaphore, #tpu.memory_space<semaphore_mem>> -> memref<!tpu.dma_semaphore, #tpu.memory_space<semaphore_mem>>
      tpu.enqueue_dma source(%46 : memref<1x512xf32, #tpu.memory_space<any>>) target(%47 : memref<1x512xf32, #tpu.memory_space<vmem>>) target_semaphore(%49 : memref<!tpu.dma_semaphore, #tpu.memory_space<semaphore_mem>>)
      %c3_i32 = arith.constant 3 : i32
      %c0_i32_26 = arith.constant 0 : i32
      %50 = tpu.memref_slice %arg6[%37, %c0_i32_26] : memref<10x512xf32, #tpu.memory_space<any>> -> memref<1x512xf32, #tpu.memory_space<any>>
      %c0_i32_27 = arith.constant 0 : i32
      %51 = tpu.memref_slice %arg11[%30, %c0_i32_27] : memref<16x512xf32, #tpu.memory_space<vmem>> -> memref<1x512xf32, #tpu.memory_space<vmem>>
      %52 = tpu.memref_slice %arg13[%c3_i32] : memref<5x!tpu.dma_semaphore, #tpu.memory_space<semaphore_mem>> -> memref<1x!tpu.dma_semaphore, #tpu.memory_space<semaphore_mem>>
      %53 = tpu.memref_squeeze %52 : memref<1x!tpu.dma_semaphore, #tpu.memory_space<semaphore_mem>> -> memref<!tpu.dma_semaphore, #tpu.memory_space<semaphore_mem>>
      tpu.enqueue_dma source(%50 : memref<1x512xf32, #tpu.memory_space<any>>) target(%51 : memref<1x512xf32, #tpu.memory_space<vmem>>) target_semaphore(%53 : memref<!tpu.dma_semaphore, #tpu.memory_space<semaphore_mem>>)
      %c4_i32 = arith.constant 4 : i32
      %c0_i32_28 = arith.constant 0 : i32
      %54 = tpu.memref_slice %arg5[%35, %c0_i32_28] : memref<5x512xf32, #tpu.memory_space<any>> -> memref<1x512xf32, #tpu.memory_space<any>>
      %c0_i32_29 = arith.constant 0 : i32
      %55 = tpu.memref_slice %arg12[%30, %c0_i32_29] : memref<16x512xf32, #tpu.memory_space<vmem>> -> memref<1x512xf32, #tpu.memory_space<vmem>>
      %56 = tpu.memref_slice %arg13[%c4_i32] : memref<5x!tpu.dma_semaphore, #tpu.memory_space<semaphore_mem>> -> memref<1x!tpu.dma_semaphore, #tpu.memory_space<semaphore_mem>>
      %57 = tpu.memref_squeeze %56 : memref<1x!tpu.dma_semaphore, #tpu.memory_space<semaphore_mem>> -> memref<!tpu.dma_semaphore, #tpu.memory_space<semaphore_mem>>
      tpu.enqueue_dma source(%54 : memref<1x512xf32, #tpu.memory_space<any>>) target(%55 : memref<1x512xf32, #tpu.memory_space<vmem>>) target_semaphore(%57 : memref<!tpu.dma_semaphore, #tpu.memory_space<semaphore_mem>>)
    }
    %c16_i32_1 = arith.constant 16 : i32
    %c0_i32_2 = arith.constant 0 : i32
    %c16_i32_3 = arith.constant 16 : i32
    %2 = arith.addi %c0_i32_2, %c16_i32_3 : i32
    %c1_i32_4 = arith.constant 1 : i32
    scf.for %arg14 = %c0_i32_2 to %2 step %c1_i32_4  : i32 {
      %c0_i32_16 = arith.constant 0 : i32
      %c0_i32_17 = arith.constant 0 : i32
      %c0_i32_18 = arith.constant 0 : i32
      %29 = tpu.memref_slice %arg8[%c0_i32_17, %c0_i32_18] : memref<16x512xf32, #tpu.memory_space<vmem>> -> memref<1x512xf32, #tpu.memory_space<vmem>>
      %c0_i32_19 = arith.constant 0 : i32
      %c0_i32_20 = arith.constant 0 : i32
      %30 = tpu.memref_slice %arg8[%c0_i32_19, %c0_i32_20] : memref<16x512xf32, #tpu.memory_space<vmem>> -> memref<1x512xf32, #tpu.memory_space<vmem>>
      %31 = tpu.memref_slice %arg13[%c0_i32_16] : memref<5x!tpu.dma_semaphore, #tpu.memory_space<semaphore_mem>> -> memref<1x!tpu.dma_semaphore, #tpu.memory_space<semaphore_mem>>
      %32 = tpu.memref_squeeze %31 : memref<1x!tpu.dma_semaphore, #tpu.memory_space<semaphore_mem>> -> memref<!tpu.dma_semaphore, #tpu.memory_space<semaphore_mem>>
      tpu.wait_dma2 semaphore(%32 : memref<!tpu.dma_semaphore, #tpu.memory_space<semaphore_mem>>) src(%29 : memref<1x512xf32, #tpu.memory_space<vmem>>) dst(%30 : memref<1x512xf32, #tpu.memory_space<vmem>>)
      %c1_i32_21 = arith.constant 1 : i32
      %c0_i32_22 = arith.constant 0 : i32
      %c0_i32_23 = arith.constant 0 : i32
      %33 = tpu.memref_slice %arg9[%c0_i32_22, %c0_i32_23] : memref<16x512xf32, #tpu.memory_space<vmem>> -> memref<1x512xf32, #tpu.memory_space<vmem>>
      %c0_i32_24 = arith.constant 0 : i32
      %c0_i32_25 = arith.constant 0 : i32
      %34 = tpu.memref_slice %arg9[%c0_i32_24, %c0_i32_25] : memref<16x512xf32, #tpu.memory_space<vmem>> -> memref<1x512xf32, #tpu.memory_space<vmem>>
      %35 = tpu.memref_slice %arg13[%c1_i32_21] : memref<5x!tpu.dma_semaphore, #tpu.memory_space<semaphore_mem>> -> memref<1x!tpu.dma_semaphore, #tpu.memory_space<semaphore_mem>>
      %36 = tpu.memref_squeeze %35 : memref<1x!tpu.dma_semaphore, #tpu.memory_space<semaphore_mem>> -> memref<!tpu.dma_semaphore, #tpu.memory_space<semaphore_mem>>
      tpu.wait_dma2 semaphore(%36 : memref<!tpu.dma_semaphore, #tpu.memory_space<semaphore_mem>>) src(%33 : memref<1x512xf32, #tpu.memory_space<vmem>>) dst(%34 : memref<1x512xf32, #tpu.memory_space<vmem>>)
      %c2_i32 = arith.constant 2 : i32
      %c0_i32_26 = arith.constant 0 : i32
      %c0_i32_27 = arith.constant 0 : i32
      %37 = tpu.memref_slice %arg10[%c0_i32_26, %c0_i32_27] : memref<16x512xf32, #tpu.memory_space<vmem>> -> memref<1x512xf32, #tpu.memory_space<vmem>>
      %c0_i32_28 = arith.constant 0 : i32
      %c0_i32_29 = arith.constant 0 : i32
      %38 = tpu.memref_slice %arg10[%c0_i32_28, %c0_i32_29] : memref<16x512xf32, #tpu.memory_space<vmem>> -> memref<1x512xf32, #tpu.memory_space<vmem>>
      %39 = tpu.memref_slice %arg13[%c2_i32] : memref<5x!tpu.dma_semaphore, #tpu.memory_space<semaphore_mem>> -> memref<1x!tpu.dma_semaphore, #tpu.memory_space<semaphore_mem>>
      %40 = tpu.memref_squeeze %39 : memref<1x!tpu.dma_semaphore, #tpu.memory_space<semaphore_mem>> -> memref<!tpu.dma_semaphore, #tpu.memory_space<semaphore_mem>>
      tpu.wait_dma2 semaphore(%40 : memref<!tpu.dma_semaphore, #tpu.memory_space<semaphore_mem>>) src(%37 : memref<1x512xf32, #tpu.memory_space<vmem>>) dst(%38 : memref<1x512xf32, #tpu.memory_space<vmem>>)
      %c3_i32 = arith.constant 3 : i32
      %c0_i32_30 = arith.constant 0 : i32
      %c0_i32_31 = arith.constant 0 : i32
      %41 = tpu.memref_slice %arg11[%c0_i32_30, %c0_i32_31] : memref<16x512xf32, #tpu.memory_space<vmem>> -> memref<1x512xf32, #tpu.memory_space<vmem>>
      %c0_i32_32 = arith.constant 0 : i32
      %c0_i32_33 = arith.constant 0 : i32
      %42 = tpu.memref_slice %arg11[%c0_i32_32, %c0_i32_33] : memref<16x512xf32, #tpu.memory_space<vmem>> -> memref<1x512xf32, #tpu.memory_space<vmem>>
      %43 = tpu.memref_slice %arg13[%c3_i32] : memref<5x!tpu.dma_semaphore, #tpu.memory_space<semaphore_mem>> -> memref<1x!tpu.dma_semaphore, #tpu.memory_space<semaphore_mem>>
      %44 = tpu.memref_squeeze %43 : memref<1x!tpu.dma_semaphore, #tpu.memory_space<semaphore_mem>> -> memref<!tpu.dma_semaphore, #tpu.memory_space<semaphore_mem>>
      tpu.wait_dma2 semaphore(%44 : memref<!tpu.dma_semaphore, #tpu.memory_space<semaphore_mem>>) src(%41 : memref<1x512xf32, #tpu.memory_space<vmem>>) dst(%42 : memref<1x512xf32, #tpu.memory_space<vmem>>)
      %c4_i32 = arith.constant 4 : i32
      %c0_i32_34 = arith.constant 0 : i32
      %c0_i32_35 = arith.constant 0 : i32
      %45 = tpu.memref_slice %arg12[%c0_i32_34, %c0_i32_35] : memref<16x512xf32, #tpu.memory_space<vmem>> -> memref<1x512xf32, #tpu.memory_space<vmem>>
      %c0_i32_36 = arith.constant 0 : i32
      %c0_i32_37 = arith.constant 0 : i32
      %46 = tpu.memref_slice %arg12[%c0_i32_36, %c0_i32_37] : memref<16x512xf32, #tpu.memory_space<vmem>> -> memref<1x512xf32, #tpu.memory_space<vmem>>
      %47 = tpu.memref_slice %arg13[%c4_i32] : memref<5x!tpu.dma_semaphore, #tpu.memory_space<semaphore_mem>> -> memref<1x!tpu.dma_semaphore, #tpu.memory_space<semaphore_mem>>
      %48 = tpu.memref_squeeze %47 : memref<1x!tpu.dma_semaphore, #tpu.memory_space<semaphore_mem>> -> memref<!tpu.dma_semaphore, #tpu.memory_space<semaphore_mem>>
      tpu.wait_dma2 semaphore(%48 : memref<!tpu.dma_semaphore, #tpu.memory_space<semaphore_mem>>) src(%45 : memref<1x512xf32, #tpu.memory_space<vmem>>) dst(%46 : memref<1x512xf32, #tpu.memory_space<vmem>>)
    }
    %c0 = arith.constant 0 : index
    %c0_5 = arith.constant 0 : index
    %3 = vector.load %arg8[%c0, %c0_5] : memref<16x512xf32, #tpu.memory_space<vmem>>, vector<16x512xf32>
    %c0_6 = arith.constant 0 : index
    %c0_7 = arith.constant 0 : index
    %4 = vector.load %arg9[%c0_6, %c0_7] : memref<16x512xf32, #tpu.memory_space<vmem>>, vector<16x512xf32>
    %c0_8 = arith.constant 0 : index
    %c0_9 = arith.constant 0 : index
    %5 = vector.load %arg10[%c0_8, %c0_9] : memref<16x512xf32, #tpu.memory_space<vmem>>, vector<16x512xf32>
    %c0_10 = arith.constant 0 : index
    %c0_11 = arith.constant 0 : index
    %6 = vector.load %arg11[%c0_10, %c0_11] : memref<16x512xf32, #tpu.memory_space<vmem>>, vector<16x512xf32>
    %c0_12 = arith.constant 0 : index
    %c0_13 = arith.constant 0 : index
    %7 = vector.load %arg12[%c0_12, %c0_13] : memref<16x512xf32, #tpu.memory_space<vmem>>, vector<16x512xf32>
    %8 = arith.addf %3, %7 : vector<16x512xf32>
    %9 = arith.addf %5, %7 : vector<16x512xf32>
    %10 = arith.addf %4, %6 : vector<16x512xf32>
    %11 = arith.subf %8, %4 : vector<16x512xf32>
    %12 = math.absf %11 : vector<16x512xf32>
    %13 = arith.subf %8, %6 : vector<16x512xf32>
    %14 = math.absf %13 : vector<16x512xf32>
    %15 = arith.addf %12, %14 : vector<16x512xf32>
    %16 = arith.subf %9, %4 : vector<16x512xf32>
    %17 = math.absf %16 : vector<16x512xf32>
    %18 = arith.addf %15, %17 : vector<16x512xf32>
    %19 = arith.subf %9, %6 : vector<16x512xf32>
    %20 = math.absf %19 : vector<16x512xf32>
    %21 = arith.addf %18, %20 : vector<16x512xf32>
    %22 = arith.addf %8, %5 : vector<16x512xf32>
    %23 = arith.subf %22, %10 : vector<16x512xf32>
    %24 = math.absf %23 : vector<16x512xf32>
    %25 = arith.addf %21, %24 : vector<16x512xf32>
    %cst = arith.constant dense<0.000000e+00> : vector<16xf32>
    %26 = vector.multi_reduction <add>, %25, %cst [1] : vector<16x512xf32> to vector<16xf32>
    %27 = vector.shape_cast %26 : vector<16xf32> to vector<16x1xf32>
    %c0_14 = arith.constant 0 : index
    %c0_15 = arith.constant 0 : index
    %28 = vector.load %arg7[%c0_14, %c0_15] : memref<16x1xf32, #tpu.memory_space<vmem>>, vector<16x1xf32>
    tpu.vector_store %arg7[%c0_14, %c0_15], %27 {strides = array<i32>} : memref<16x1xf32, #tpu.memory_space<vmem>>, vector<16x1xf32>,
    return
  }
  func.func @transform_3(%arg0: i32, %arg1: memref<32xi32, #tpu.memory_space<smem>>, %arg2: memref<32xi32, #tpu.memory_space<smem>>, %arg3: memref<32xi32, #tpu.memory_space<smem>>) -> (i32, i32) {
    %c0_i32 = arith.constant 0 : i32
    %c0_i32_0 = arith.constant 0 : i32
    return %arg0, %c0_i32 : i32, i32
  }
}

</mosaic_0001>

<llo_original>
// kernel: tpu_custom_call.1
$region0: #{tpu_custom_call.1}
  #allocation0 [shape = 'u32[]', space=smem, size = 0x4, offset = 0x4, fixed_abs, tag = 'smem constant byte address 0x4 - core index']
  #allocation1 [shape = 'u32[144,128]{1,0:T(1,128)}', space=vmem, size = 0x12000, scoped, tag = 'internal scratch']
  #allocation2 [shape = 'f32[16,512]{1,0:T(8,128)}', space=vmem, size = 0x8000, scoped, tag = 'scratch operand']
  #allocation3 [shape = 'f32[16,512]{1,0:T(8,128)}', space=vmem, size = 0x8000, scoped, tag = 'scratch operand']
  #allocation4 [shape = 'f32[16,512]{1,0:T(8,128)}', space=vmem, size = 0x8000, scoped, tag = 'scratch operand']
  #allocation5 [shape = 'f32[16,512]{1,0:T(8,128)}', space=vmem, size = 0x8000, scoped, tag = 'scratch operand']
  #allocation6 [shape = 'f32[16,512]{1,0:T(8,128)}', space=vmem, size = 0x8000, scoped, tag = 'scratch operand']
  #allocation7 [shape = 's32[5]{0}', space=sflag, size = 0x14, scoped, tag = 'scratch operand']
  #allocation8 [shape = 's32[1]{0}', space=sflag, size = 0x4, scoped, tag = 'scoped memory for tpu_custom_call.1']
  #allocation9 [shape = 'u8[512]{0}', space=smem, size = 0x200, scoped, tag = 'prefetched SMEM operand 0']
  #allocation10 [shape = 'u8[512]{0}', space=smem, size = 0x200, scoped, tag = 'prefetched SMEM operand 1']
  #allocation11 [shape = 'u8[512]{0}', space=smem, size = 0x200, scoped, tag = 'prefetched SMEM operand 2']
  #allocation12 [shape = 's32[]', space=sflag, size = 0x4, offset = 0, fixed_abs, tag = 'sflag constant byte address 0x0 - dummy sync flag']
  #allocation13 [shape = 's32[]', space=sflag, size = 0x4, offset = 0, fixed_abs, tag = 'sflag constant byte address 0x0 - dummy sync flag']
  #allocation14 [shape = 's32[]', space=sflag, size = 0x4, offset = 0, fixed_abs, tag = 'sflag constant byte address 0x0 - dummy sync flag']
  #allocation15 [shape = 's32[]', space=sflag, size = 0x4, offset = 0, fixed_abs, tag = 'sflag constant byte address 0x0 - dummy sync flag']
  #allocation16 [shape = 's32[]', space=sflag, size = 0x4, offset = 0, fixed_abs, tag = 'sflag constant byte address 0x0 - dummy sync flag']
  %s0 = inlined_call_operand.hbm [shape: s32[32], index: 0, kind: input, shape index: {}]
  %s1 = inlined_call_operand.vmem [shape: s32[32], index: 1, kind: input, shape index: {}]
  %s2 = inlined_call_operand.vmem [shape: s32[32], index: 2, kind: input, shape index: {}]
  %s3 = inlined_call_operand.hbm [shape: f32[10,512], index: 3, kind: input, shape index: {}]
  %s4 = inlined_call_operand.hbm [shape: f32[5,512], index: 4, kind: input, shape index: {}]
  %s5 = inlined_call_operand.hbm [shape: f32[10,512], index: 5, kind: input, shape index: {}]
  %s6 = inlined_call_operand.vmem [shape: f32[32,1], index: 6, kind: output, shape index: {}]
  %s7 = sld [smem:[#allocation0]]
  $region39: #{tpu_custom_call.1} parent=0
    _
  %s9 = ssub.s32 1, %s7
  %s10 = scalar_select 0, %s9, %s7
  %12 = dma.hbm_to_smem %s0, 16, [#allocation9], [#allocation8]
  %s13 = sshll.u32 %s1, 4
  %s14 = int_to_ptr.vmem [resolvable:$true] %s13
  %16 = dma.vmem_to_smem %s14, 16, [#allocation10], [#allocation8]
  %s17 = sshll.u32 %s2, 4
  %s18 = int_to_ptr.vmem [resolvable:$true] %s17
  %20 = dma.vmem_to_smem %s18, 16, [#allocation11], [#allocation8]
  %21 = dma.done [#allocation8], 48
  %22 = sfence
  loop: start=0, step=1, limit=3
  $region2: #{tpu_custom_call.1} parent=0 // loop_pre_header
    _
  $region3: #{tpu_custom_call.1} parent=0 // loop_header
    %s24 = sphi 0, %s28
    %p25 = scmp.ge.s32.totalorder %s24, 3
    %s33 = sphi 0, %s35
    %s36 = sphi 0, %s33
    %s46 = sphi 0, %s36
  $region4: #{tpu_custom_call.1} parent=0 // loop_header_branch
    %27 = sbr.rel (%p25) target = $region8
  $region5: #{tpu_custom_call.1} parent=0 // loop_body
    %s29 = ssub.s32 %s24, 1
    %s30 = sadd.s32 %s24, 1
    %s31 = ssub.s32 %s24, %s30
    %p32 = scmp.eq.s32.totalorder %s31, 0
    %s34 = sadd.s32 %s33, 1
    %s35 = scalar_select %p32, %s33, %s34
    %p37 = pneg %p32
    %p38 = scmp.eq.s32.totalorder %s24, 1
    %p39 = por %p37, %p38
    %p40 = scmp.ne.s32.totalorder %s33, %s36
    %p41 = scmp.eq.s32.totalorder %s24, 0
    %p42 = por %p40, %p41
    %p43 = scmp.ne.s32.totalorder %s33, %s36
    %p44 = scmp.eq.s32.totalorder %s29, 1
    %p45 = por %p43, %p44
    %p47 = scmp.ne.s32.totalorder %s36, %s46
    %p48 = scmp.eq.s32.totalorder %s29, 0
    %p49 = por %p47, %p48
    %p50 = scmp.lt.s32.totalorder %s24, 2
    // Predicated region
    $region9: #{tpu_custom_call.1} parent=5 // pred_check
      %p51 = pneg %p50
    $region10: #{tpu_custom_call.1} parent=5 // pred_check_branch
      %53 = sbr.rel (%p51) target = $region12
    $region11: #{tpu_custom_call.1} parent=5 // pred_region
      %p54 = pneg %p42
      %p55 = pneg %p39
      %s56 = smul.u32 2, %s24
      %p57 = scmp.lt.s32.totalorder %s56, 3
      %s58 = scalar_select %p57, %s56, 3
      %s59 = smul.addr %s58, 8
      %s60 = scalar_lea.vmem %s6, %s59
      %s61 = smul.u32 2, %s24
      %p62 = scmp.lt.s32.totalorder %s61, 3
      %s63 = scalar_select %p62, %s61, 3
      %s64 = smul.addr %s63, 8
      %s65 = scalar_lea.vmem %s6, %s64
      %s66 = smul.u32 2, %s24
      %s67 = smul.u32 %s24, 16
      loop: start=0, step=1, limit=16
      $region13: #{tpu_custom_call.1} parent=11 // loop_pre_header
        _
      $region14: #{tpu_custom_call.1} parent=11 // loop_header
        %s69 = sphi 0, %s73
        %p70 = scmp.ge.s32.totalorder %s69, 16
      $region15: #{tpu_custom_call.1} parent=11 // loop_header_branch
        %72 = sbr.rel (%p70) target = $region19
      $region16: #{tpu_custom_call.1} parent=11 // loop_body
        %s74 = sadd.s32 %s67, %s69
        %s75 = sld [smem:[#allocation9 + %s74]]
        %s76 = sld [smem:[#allocation10 + %s74]]
        %s77 = sld [smem:[#allocation11 + %s74]]
        %s78 = sshrl.u32 %s75, 3
        %s79 = sand.u32 %s75, 7
        %s80 = smul.u32 %s78, 32
        %s81 = sadd.s32 %s79, %s80
        %s82 = smul.addr %s81, 16
        %s83 = scalar_lea.hbm %s3, %s82
        %s84 = sshrl.u32 %s69, 3
        %s85 = sand.u32 %s69, 7
        %s86 = smul.u32 %s84, 32
        %s87 = sadd.s32 %s85, %s86
        %s88 = scalar_lea.vmem [#allocation2], %s87
        %s90 = sshll.u32 %s88, 4
        %s91 = int_to_ptr.vmem [resolvable:$true] %s90
        %93 = dma.hbm_to_vmem [thread:$0]  %s83, 64, %s91, [#allocation7], 128, 128, 1
        %s94 = sshrl.u32 %s77, 3
        %s95 = sand.u32 %s77, 7
        %s96 = smul.u32 %s94, 32
        %s97 = sadd.s32 %s95, %s96
        %s98 = smul.addr %s97, 16
        %s99 = scalar_lea.hbm %s3, %s98
        %s100 = scalar_lea.vmem [#allocation3], %s87
        %s101 = scalar_lea.sflag [#allocation7], 1
        %s103 = sshll.u32 %s100, 4
        %s104 = int_to_ptr.vmem [resolvable:$true] %s103
        %106 = dma.hbm_to_vmem [thread:$0]  %s99, 64, %s104, %s101, 128, 128, 1
        %s107 = smul.addr %s81, 16
        %s108 = scalar_lea.hbm %s5, %s107
        %s109 = scalar_lea.vmem [#allocation4], %s87
        %s110 = scalar_lea.sflag [#allocation7], 2
        %s112 = sshll.u32 %s109, 4
        %s113 = int_to_ptr.vmem [resolvable:$true] %s112
        %115 = dma.hbm_to_vmem [thread:$0]  %s108, 64, %s113, %s110, 128, 128, 1
        %s116 = smul.addr %s97, 16
        %s117 = scalar_lea.hbm %s5, %s116
        %s118 = scalar_lea.vmem [#allocation5], %s87
        %s119 = scalar_lea.sflag [#allocation7], 3
        %s121 = sshll.u32 %s118, 4
        %s122 = int_to_ptr.vmem [resolvable:$true] %s121
        %124 = dma.hbm_to_vmem [thread:$0]  %s117, 64, %s122, %s119, 128, 128, 1
        %s125 = sshrl.u32 %s76, 3
        %s126 = sand.u32 %s76, 7
        %s127 = smul.u32 %s125, 32
        %s128 = sadd.s32 %s126, %s127
        %s129 = smul.addr %s128, 16
        %s130 = scalar_lea.hbm %s4, %s129
        %s131 = scalar_lea.vmem [#allocation6], %s87
        %s132 = scalar_lea.sflag [#allocation7], 4
        %s134 = sshll.u32 %s131, 4
        %s135 = int_to_ptr.vmem [resolvable:$true] %s134
        %137 = dma.hbm_to_vmem [thread:$0]  %s130, 64, %s135, %s132, 128, 128, 1
      $region17: #{tpu_custom_call.1} parent=11 // loop_footer
        %s73 = sadd.s32 1, %s69
      $region18: #{tpu_custom_call.1} parent=11 // loop_footer_branch
        %68 = sbr.rel target = $region14
      $region19: #{tpu_custom_call.1} parent=11 // loop_exit
        _
      loop: start=0, step=1, limit=16
      $region20: #{tpu_custom_call.1} parent=11 // loop_pre_header
        _
      $region21: #{tpu_custom_call.1} parent=11 // loop_header
        %s139 = sphi 0, %s143
        %p140 = scmp.ge.s32.totalorder %s139, 16
      $region22: #{tpu_custom_call.1} parent=11 // loop_header_branch
        %142 = sbr.rel (%p140) target = $region26
      $region23: #{tpu_custom_call.1} parent=11 // loop_body
        %s144 = smul.u32 1, 4
        %s145 = sshll.u32 %s144, 4
        %146 = dma.done [#allocation7], %s145
        %s147 = scalar_lea.sflag [#allocation7], 1
        %s148 = sshll.u32 %s144, 4
        %149 = dma.done %s147, %s148
        %s150 = scalar_lea.sflag [#allocation7], 2
        %s151 = sshll.u32 %s144, 4
        %152 = dma.done %s150, %s151
        %s153 = scalar_lea.sflag [#allocation7], 3
        %s154 = sshll.u32 %s144, 4
        %155 = dma.done %s153, %s154
        %s156 = scalar_lea.sflag [#allocation7], 4
        %s157 = sshll.u32 %s144, 4
        %158 = dma.done %s156, %s157
      $region24: #{tpu_custom_call.1} parent=11 // loop_footer
        %s143 = sadd.s32 1, %s139
      $region25: #{tpu_custom_call.1} parent=11 // loop_footer_branch
        %138 = sbr.rel target = $region21
      $region26: #{tpu_custom_call.1} parent=11 // loop_exit
        _
      %v159 = vld [vmem:[#allocation2] sm:$0xff]
      %v160 = vld [vmem:[#allocation2 + $0x8] sm:$0xff]
      %v161 = vld [vmem:[#allocation2 + $0x10] sm:$0xff]
      %v162 = vld [vmem:[#allocation2 + $0x18] sm:$0xff]
      %v163 = vld [vmem:[#allocation2 + $0x20] sm:$0xff]
      %v164 = vld [vmem:[#allocation2 + $0x28] sm:$0xff]
      %v165 = vld [vmem:[#allocation2 + $0x30] sm:$0xff]
      %v166 = vld [vmem:[#allocation2 + $0x38] sm:$0xff]
      %v167 = vld [vmem:[#allocation3] sm:$0xff]
      %v168 = vld [vmem:[#allocation3 + $0x8] sm:$0xff]
      %v169 = vld [vmem:[#allocation3 + $0x10] sm:$0xff]
      %v170 = vld [vmem:[#allocation3 + $0x18] sm:$0xff]
      %v171 = vld [vmem:[#allocation3 + $0x20] sm:$0xff]
      %v172 = vld [vmem:[#allocation3 + $0x28] sm:$0xff]
      %v173 = vld [vmem:[#allocation3 + $0x30] sm:$0xff]
      %v174 = vld [vmem:[#allocation3 + $0x38] sm:$0xff]
      %v175 = vld [vmem:[#allocation4] sm:$0xff]
      %v176 = vld [vmem:[#allocation4 + $0x8] sm:$0xff]
      %v177 = vld [vmem:[#allocation4 + $0x10] sm:$0xff]
      %v178 = vld [vmem:[#allocation4 + $0x18] sm:$0xff]
      %v179 = vld [vmem:[#allocation4 + $0x20] sm:$0xff]
      %v180 = vld [vmem:[#allocation4 + $0x28] sm:$0xff]
      %v181 = vld [vmem:[#allocation4 + $0x30] sm:$0xff]
      %v182 = vld [vmem:[#allocation4 + $0x38] sm:$0xff]
      %v183 = vld [vmem:[#allocation5] sm:$0xff]
      %v184 = vld [vmem:[#allocation5 + $0x8] sm:$0xff]
      %v185 = vld [vmem:[#allocation5 + $0x10] sm:$0xff]
      %v186 = vld [vmem:[#allocation5 + $0x18] sm:$0xff]
      %v187 = vld [vmem:[#allocation5 + $0x20] sm:$0xff]
      %v188 = vld [vmem:[#allocation5 + $0x28] sm:$0xff]
      %v189 = vld [vmem:[#allocation5 + $0x30] sm:$0xff]
      %v190 = vld [vmem:[#allocation5 + $0x38] sm:$0xff]
      %v191 = vld [vmem:[#allocation6] sm:$0xff]
      %v192 = vld [vmem:[#allocation6 + $0x8] sm:$0xff]
      %v193 = vld [vmem:[#allocation6 + $0x10] sm:$0xff]
      %v194 = vld [vmem:[#allocation6 + $0x18] sm:$0xff]
      %v195 = vld [vmem:[#allocation6 + $0x20] sm:$0xff]
      %v196 = vld [vmem:[#allocation6 + $0x28] sm:$0xff]
      %v197 = vld [vmem:[#allocation6 + $0x30] sm:$0xff]
      %v198 = vld [vmem:[#allocation6 + $0x38] sm:$0xff]
      %v199 = vadd.f32 %v159, %v191
      %v200 = vadd.f32 %v160, %v192
      %v201 = vadd.f32 %v161, %v193
      %v202 = vadd.f32 %v162, %v194
      %v203 = vadd.f32 %v163, %v195
      %v204 = vadd.f32 %v164, %v196
      %v205 = vadd.f32 %v165, %v197
      %v206 = vadd.f32 %v166, %v198
      %v207 = vadd.f32 %v175, %v191
      %v208 = vadd.f32 %v176, %v192
      %v209 = vadd.f32 %v177, %v193
      %v210 = vadd.f32 %v178, %v194
      %v211 = vadd.f32 %v179, %v195
      %v212 = vadd.f32 %v180, %v196
      %v213 = vadd.f32 %v181, %v197
      %v214 = vadd.f32 %v182, %v198
      %v215 = vadd.f32 %v167, %v183
      %v216 = vadd.f32 %v168, %v184
      %v217 = vadd.f32 %v169, %v185
      %v218 = vadd.f32 %v170, %v186
      %v219 = vadd.f32 %v171, %v187
      %v220 = vadd.f32 %v172, %v188
      %v221 = vadd.f32 %v173, %v189
      %v222 = vadd.f32 %v174, %v190
      %v223 = vsub.f32 %v199, %v167
      %v224 = vsub.f32 %v200, %v168
      %v225 = vsub.f32 %v201, %v169
      %v226 = vsub.f32 %v202, %v170
      %v227 = vsub.f32 %v203, %v171
      %v228 = vsub.f32 %v204, %v172
      %v229 = vsub.f32 %v205, %v173
      %v230 = vsub.f32 %v206, %v174
      %v231 = vand.u32 2147483647, %v223
      %v232 = vand.u32 2147483647, %v224
      %v233 = vand.u32 2147483647, %v225
      %v234 = vand.u32 2147483647, %v226
      %v235 = vand.u32 2147483647, %v227
      %v236 = vand.u32 2147483647, %v228
      %v237 = vand.u32 2147483647, %v229
      %v238 = vand.u32 2147483647, %v230
      %v239 = vsub.f32 %v199, %v183
      %v240 = vsub.f32 %v200, %v184
      %v241 = vsub.f32 %v201, %v185
      %v242 = vsub.f32 %v202, %v186
      %v243 = vsub.f32 %v203, %v187
      %v244 = vsub.f32 %v204, %v188
      %v245 = vsub.f32 %v205, %v189
      %v246 = vsub.f32 %v206, %v190
      %v247 = vand.u32 2147483647, %v239
      %v248 = vand.u32 2147483647, %v240
      %v249 = vand.u32 2147483647, %v241
      %v250 = vand.u32 2147483647, %v242
      %v251 = vand.u32 2147483647, %v243
      %v252 = vand.u32 2147483647, %v244
      %v253 = vand.u32 2147483647, %v245
      %v254 = vand.u32 2147483647, %v246
      %v255 = vadd.f32 %v231, %v247
      %v256 = vadd.f32 %v232, %v248
      %v257 = vadd.f32 %v233, %v249
      %v258 = vadd.f32 %v234, %v250
      %v259 = vadd.f32 %v235, %v251
      %v260 = vadd.f32 %v236, %v252
      %v261 = vadd.f32 %v237, %v253
      %v262 = vadd.f32 %v238, %v254
      %v263 = vsub.f32 %v207, %v167
      %v264 = vsub.f32 %v208, %v168
      %v265 = vsub.f32 %v209, %v169
      %v266 = vsub.f32 %v210, %v170
      %v267 = vsub.f32 %v211, %v171
      %v268 = vsub.f32 %v212, %v172
      %v269 = vsub.f32 %v213, %v173
      %v270 = vsub.f32 %v214, %v174
      %v271 = vand.u32 2147483647, %v263
      %v272 = vand.u32 2147483647, %v264
      %v273 = vand.u32 2147483647, %v265
      %v274 = vand.u32 2147483647, %v266
      %v275 = vand.u32 2147483647, %v267
      %v276 = vand.u32 2147483647, %v268
      %v277 = vand.u32 2147483647, %v269
      %v278 = vand.u32 2147483647, %v270
      %v279 = vadd.f32 %v255, %v271
      %v280 = vadd.f32 %v256, %v272
      %v281 = vadd.f32 %v257, %v273
      %v282 = vadd.f32 %v258, %v274
      %v283 = vadd.f32 %v259, %v275
      %v284 = vadd.f32 %v260, %v276
      %v285 = vadd.f32 %v261, %v277
      %v286 = vadd.f32 %v262, %v278
      %v287 = vsub.f32 %v207, %v183
      %v288 = vsub.f32 %v208, %v184
      %v289 = vsub.f32 %v209, %v185
      %v290 = vsub.f32 %v210, %v186
      %v291 = vsub.f32 %v211, %v187
      %v292 = vsub.f32 %v212, %v188
      %v293 = vsub.f32 %v213, %v189
      %v294 = vsub.f32 %v214, %v190
      %v295 = vand.u32 2147483647, %v287
      %v296 = vand.u32 2147483647, %v288
      %v297 = vand.u32 2147483647, %v289
      %v298 = vand.u32 2147483647, %v290
      %v299 = vand.u32 2147483647, %v291
      %v300 = vand.u32 2147483647, %v292
      %v301 = vand.u32 2147483647, %v293
      %v302 = vand.u32 2147483647, %v294
      %v303 = vadd.f32 %v279, %v295
      %v304 = vadd.f32 %v280, %v296
      %v305 = vadd.f32 %v281, %v297
      %v306 = vadd.f32 %v282, %v298
      %v307 = vadd.f32 %v283, %v299
      %v308 = vadd.f32 %v284, %v300
      %v309 = vadd.f32 %v285, %v301
      %v310 = vadd.f32 %v286, %v302
      %v311 = vadd.f32 %v199, %v175
      %v312 = vadd.f32 %v200, %v176
      %v313 = vadd.f32 %v201, %v177
      %v314 = vadd.f32 %v202, %v178
      %v315 = vadd.f32 %v203, %v179
      %v316 = vadd.f32 %v204, %v180
      %v317 = vadd.f32 %v205, %v181
      %v318 = vadd.f32 %v206, %v182
      %v319 = vsub.f32 %v311, %v215
      %v320 = vsub.f32 %v312, %v216
      %v321 = vsub.f32 %v313, %v217
      %v322 = vsub.f32 %v314, %v218
      %v323 = vsub.f32 %v315, %v219
      %v324 = vsub.f32 %v316, %v220
      %v325 = vsub.f32 %v317, %v221
      %v326 = vsub.f32 %v318, %v222
      %v327 = vand.u32 2147483647, %v319
      %v328 = vand.u32 2147483647, %v320
      %v329 = vand.u32 2147483647, %v321
      %v330 = vand.u32 2147483647, %v322
      %v331 = vand.u32 2147483647, %v323
      %v332 = vand.u32 2147483647, %v324
      %v333 = vand.u32 2147483647, %v325
      %v334 = vand.u32 2147483647, %v326
      %v335 = vadd.f32 %v303, %v327
      %v336 = vadd.f32 %v304, %v328
      %v337 = vadd.f32 %v305, %v329
      %v338 = vadd.f32 %v306, %v330
      %v339 = vadd.f32 %v307, %v331
      %v340 = vadd.f32 %v308, %v332
      %v341 = vadd.f32 %v309, %v333
      %v342 = vadd.f32 %v310, %v334
      %v343 = vadd.f32 %v335, %v336
      %v344 = vadd.f32 %v343, %v337
      %v345 = vadd.f32 %v344, %v338
      %346 = vadd.xlane.f32.xlu0 %v345
      %v347 = vpop.xlane.xlu0 %346
      %v348 = vadd.f32 %v339, %v340
      %v349 = vadd.f32 %v348, %v341
      %v350 = vadd.f32 %v349, %v342
      %351 = vadd.xlane.f32.xlu0 %v350
      %v352 = vpop.xlane.xlu0 %351
      %vm353 = vcmask 7168
      %354 = vst.msk [vmem:[%s65] sm:$0xff] %vm353, %v347
      %355 = vst.msk [vmem:[%s65 + $0x8] sm:$0xff] %vm353, %v352
      %s356 = smul.u32 2, %s24
      %p357 = scmp.lt.s32.totalorder %s356, 3
      %s358 = scalar_select %p357, %s356, 3
      %s359 = smul.addr %s358, 8
      %s360 = scalar_lea.vmem %s6, %s359
      // Predicated region
      $region27: #{tpu_custom_call.1} parent=11 // pred_check
        %p361 = pneg %p39
      $region28: #{tpu_custom_call.1} parent=11 // pred_check_branch
        %363 = sbr.rel (%p361) target = $region30
      $region29: #{tpu_custom_call.1} parent=11 // pred_region
        %s364 = smul.u32 2, %s24
      $region30: #{tpu_custom_call.1} parent=11 // pred_fallthru
        _
    $region12: #{tpu_custom_call.1} parent=5 // pred_fallthru
      _
    %p365 = scmp.le.s32.totalorder 1, %s24
    // Predicated region
    $region31: #{tpu_custom_call.1} parent=5 // pred_check
      %p366 = pneg %p365
    $region32: #{tpu_custom_call.1} parent=5 // pred_check_branch
      %368 = sbr.rel (%p366) target = $region34
    $region33: #{tpu_custom_call.1} parent=5 // pred_region
      %s369 = ssub.s32 %s24, 1
      // Predicated region
      $region35: #{tpu_custom_call.1} parent=33 // pred_check
        %p370 = pneg %p45
      $region36: #{tpu_custom_call.1} parent=33 // pred_check_branch
        %372 = sbr.rel (%p370) target = $region38
      $region37: #{tpu_custom_call.1} parent=33 // pred_region
        %s373 = smul.u32 2, %s29
        %p374 = scmp.lt.s32.totalorder %s373, 3
        %s375 = scalar_select %p374, %s373, 3
        %s376 = smul.addr %s375, 8
        %s377 = scalar_lea.vmem %s6, %s376
      $region38: #{tpu_custom_call.1} parent=33 // pred_fallthru
        _
    $region34: #{tpu_custom_call.1} parent=5 // pred_fallthru
      _
  $region6: #{tpu_custom_call.1} parent=0 // loop_footer
    %s28 = sadd.s32 1, %s24
  $region7: #{tpu_custom_call.1} parent=0 // loop_footer_branch
    %23 = sbr.rel target = $region3
  $region8: #{tpu_custom_call.1} parent=0 // loop_exit
    _
  %378 = vsyncmov [#allocation7]
  %s379 = vpop.sfrf %378
  %p380 = scmp.eq.s32.totalorder %s379, 0
  %p381 = pneg %p380
  %383 = shalt.err (%p381)
  %s384 = scalar_lea.sflag [#allocation7], 1
  %385 = vsyncmov %s384
  %s386 = vpop.sfrf %385
  %p387 = scmp.eq.s32.totalorder %s386, 0
  %p388 = pneg %p387
  %390 = shalt.err (%p388)
  %s391 = scalar_lea.sflag [#allocation7], 2
  %392 = vsyncmov %s391
  %s393 = vpop.sfrf %392
  %p394 = scmp.eq.s32.totalorder %s393, 0
  %p395 = pneg %p394
  %397 = shalt.err (%p395)
  %s398 = scalar_lea.sflag [#allocation7], 3
  %399 = vsyncmov %s398
  %s400 = vpop.sfrf %399
  %p401 = scmp.eq.s32.totalorder %s400, 0
  %p402 = pneg %p401
  %404 = shalt.err (%p402)
  %s405 = scalar_lea.sflag [#allocation7], 4
  %406 = vsyncmov %s405
  %s407 = vpop.sfrf %406
  %p408 = scmp.eq.s32.totalorder %s407, 0
  %p409 = pneg %p408
  %411 = shalt.err (%p409)

</llo_original>
